<compile_context>
chip_gen: v5e
topology: v5e:2x2
jax: 0.10.0
libtpu: 0.0.40
codegen_flags: <defaults>
</compile_context>

<pallas_src>
import jax
import jax.numpy as jnp
from jax.experimental import pallas as pl
from jax.experimental.pallas import tpu as pltpu


# ----------------------------------------------------------------------------
# Pallas kernel: 1x1 conv as channel-mix matmul on a (C, tn) pixel tile.
# ----------------------------------------------------------------------------
def _conv1x1_kernel(x_ref, w_ref, o_ref):
    # x_ref: (C, tn) tile of one batch element (batch dim squeezed out),
    # w_ref: (C, C) weight[co, ci], o_ref: (C, tn) output tile.
    o_ref[...] = jnp.dot(
        w_ref[...],
        x_ref[...],
        precision=jax.lax.Precision.HIGHEST,
        preferred_element_type=jnp.float32,
    ).astype(o_ref.dtype)


def conv1x1_pallas(x_nchw, weight, *, tn=4096):
    """F.conv2d(x, weight.view(C, C, 1, 1)) for NCHW input via Pallas."""
    b, c, h, w = x_nchw.shape
    hw = h * w
    itemsize = jnp.dtype(x_nchw.dtype).itemsize

    # Native layout: (B, C, H*W). Free reshape (contiguous), no transpose —
    # C already sits above the contiguous spatial axis, which maps to lanes.
    x_mat = x_nchw.reshape(b, c, hw)

    # Pick the pixel tile: multiple of 128, no larger than needed, and small
    # enough that 2 double-buffered (x + out) tiles fit comfortably in VMEM
    # (budget re-derived for v7x's 64 MiB per-TC VMEM / 32 MiB scoped default).
    hw128 = ((hw + 127) // 128) * 128
    max_tn_vmem = (24 * 1024 * 1024) // (4 * c * itemsize)  # 2 bufs x (x+out)
    tn = min(tn, hw128, max(128, (max_tn_vmem // 128) * 128))
    tn = max(128, (tn // 128) * 128)

    # Ragged tail: pad the pixel axis only if needed (padded lanes compute
    # garbage that is sliced off afterwards).
    hw_pad = ((hw + tn - 1) // tn) * tn
    if hw_pad != hw:
        x_mat = jnp.pad(x_mat, ((0, 0), (0, 0), (0, hw_pad - hw)))

    n_tiles = hw_pad // tn
    grid = (b, n_tiles)

    # Explicit VMEM budget: double-buffered x + out tiles, plus the weight.
    tile_bytes = 2 * (2 * c * tn * itemsize) + 2 * c * c * itemsize
    vmem_limit = min(max(tile_bytes + (1 << 20), 16 << 20), 48 << 20)

    cost = pl.CostEstimate(
        flops=2 * c * c * b * hw_pad,
        transcendentals=0,
        bytes_accessed=2 * b * c * hw_pad * itemsize + c * c * itemsize,
    )

    z_mat = pl.pallas_call(
        _conv1x1_kernel,
        out_shape=jax.ShapeDtypeStruct((b, c, hw_pad), x_nchw.dtype),
        grid_spec=pltpu.PrefetchScalarGridSpec(
            num_scalar_prefetch=0,
            grid=grid,
            in_specs=[
                # Batch dim squeezed; kernel sees a lane-dense (C, tn) tile.
                pl.BlockSpec((None, c, tn), lambda bi, i: (bi, 0, i)),
                # Grid-invariant CxC weight (stays resident in VMEM).
                pl.BlockSpec((c, c), lambda bi, i: (0, 0)),
            ],
            out_specs=pl.BlockSpec((None, c, tn), lambda bi, i: (bi, 0, i)),
        ),
        compiler_params=pltpu.CompilerParams(
            dimension_semantics=("parallel", "parallel"),
            vmem_limit_bytes=vmem_limit,
        ),
        cost_estimate=cost,
    )(x_mat, weight)

    if hw_pad != hw:
        z_mat = z_mat[:, :, :hw]
    # TODO(synk): for tiny C (e.g. 4) this op is one HBM read+write of x;
    # fusing it into the adjacent flow-step kernel is the only further win.
    return z_mat.reshape(b, c, h, w)


# ----------------------------------------------------------------------------
# Module-equivalent: parameter init + forward (glue in plain JAX).
# ----------------------------------------------------------------------------
class InvertibleConv1x1:
    def __init__(self, num_channels, LU_decomposed, key):
        self.w_shape = (num_channels, num_channels)
        self.LU_decomposed = LU_decomposed
        w_init = jnp.linalg.qr(
            jax.random.normal(key, self.w_shape, dtype=jnp.float32)
        )[0]
        if not LU_decomposed:
            self.weight = w_init
        else:
            p, lower, upper = jax.scipy.linalg.lu(w_init)  # w_init = p @ l @ u
            s = jnp.diag(upper)
            self.p = p
            self.sign_s = jnp.sign(s)
            self.log_s = jnp.log(jnp.abs(s))
            self.lower = lower
            self.upper = jnp.triu(upper, 1)
            self.l_mask = jnp.tril(jnp.ones(self.w_shape, jnp.float32), -1)
            self.eye = jnp.eye(num_channels, dtype=jnp.float32)

    def get_weight(self, x, reverse):
        b, c, h, w = x.shape
        if not self.LU_decomposed:
            dlogdet = jnp.linalg.slogdet(self.weight)[1] * h * w
            weight = jnp.linalg.inv(self.weight) if reverse else self.weight
        else:
            lower = self.lower * self.l_mask + self.eye
            u = self.upper * self.l_mask.T
            u = u + jnp.diag(self.sign_s * jnp.exp(self.log_s))
            dlogdet = jnp.sum(self.log_s) * h * w
            if reverse:
                u_inv = jnp.linalg.inv(u)
                l_inv = jnp.linalg.inv(lower)
                p_inv = jnp.linalg.inv(self.p)
                weight = u_inv @ (l_inv @ p_inv)
            else:
                weight = self.p @ (lower @ u)
        return weight, dlogdet

    def forward(self, x, logdet=None, reverse=False):
        weight, dlogdet = self.get_weight(x, reverse)
        z = conv1x1_pallas(x, weight)  # 1x1 conv (the hot path) in Pallas
        if logdet is not None:
            logdet = logdet - dlogdet if reverse else logdet + dlogdet
        return z, logdet


# ----------------------------------------------------------------------------
# Demo
# ----------------------------------------------------------------------------
if __name__ == "__main__":
    key = jax.random.PRNGKey(0)
    k_w, k_x, k_ld = jax.random.split(key, 3)

    B, C, H, W = 2, 4, 16, 16
    x = jax.random.normal(k_x, (B, C, H, W), dtype=jnp.float32)
    logdet = jax.random.normal(k_ld, (B,), dtype=jnp.float32)

    # Non-LU-decomposed variant (forward)
    mod = InvertibleConv1x1(C, LU_decomposed=False, key=k_w)
    z, new_logdet = mod.forward(x, logdet=logdet, reverse=False)
    jax.block_until_ready(z)
    jax.block_until_ready(new_logdet)

    # Reference check against plain-JAX 1x1 conv semantics
    w_ref, dld_ref = mod.get_weight(x, reverse=False)
    z_ref = jnp.einsum(
        "oc,bchw->bohw", w_ref, x, precision=jax.lax.Precision.HIGHEST
    )
    assert jnp.allclose(z, z_ref, atol=1e-5, rtol=1e-5)
    assert jnp.allclose(new_logdet, logdet + dld_ref, atol=1e-5, rtol=1e-5)

    # LU-decomposed variant (forward + reverse round-trip)
    mod_lu = InvertibleConv1x1(C, LU_decomposed=True, key=k_w)
    z2, ld2 = mod_lu.forward(x, logdet=logdet, reverse=False)
    x_back, ld_back = mod_lu.forward(z2, logdet=ld2, reverse=True)
    jax.block_until_ready(x_back)
    assert jnp.allclose(x_back, x, atol=1e-4, rtol=1e-4)
    assert jnp.allclose(ld_back, logdet, atol=1e-4, rtol=1e-4)

    print("KERNEL_OK")
</pallas_src>

<mosaic_0001>
module attributes {stable_mosaic.version = 11 : i64} {
  func.func @_conv1x1_kernel(%arg0: i32, %arg1: i32, %arg2: memref<1x4x256xf32, #tpu.memory_space<vmem>>, %arg3: memref<4x4xf32, #tpu.memory_space<vmem>>, %arg4: memref<1x4x256xf32, #tpu.memory_space<vmem>>) attributes {dimension_semantics = [#tpu.dimension_semantics<parallel>, #tpu.dimension_semantics<parallel>], iteration_bounds = array<i64: 2, 1>, scalar_prefetch = 0 : i64, scratch_operands = 0 : i64, tpu.core_type = #tpu.core_type<tc>, window_params = [{transform_indices = @transform_0, window_bounds = array<i64: 1, 4, 256>}, {pipeline_mode = #tpu.pipeline_mode<synchronous>, transform_indices = @transform_1, window_bounds = array<i64: 4, 4>}, {transform_indices = @transform_2, window_bounds = array<i64: 1, 4, 256>}]} {
    %c0 = arith.constant 0 : index
    %c0_0 = arith.constant 0 : index
    %0 = vector.load %arg3[%c0, %c0_0] : memref<4x4xf32, #tpu.memory_space<vmem>>, vector<4x4xf32>
    %c0_1 = arith.constant 0 : index
    %c0_2 = arith.constant 0 : index
    %c0_3 = arith.constant 0 : index
    %1 = vector.load %arg2[%c0_1, %c0_2, %c0_3] : memref<1x4x256xf32, #tpu.memory_space<vmem>>, vector<1x4x256xf32>
    %2 = vector.shape_cast %1 : vector<1x4x256xf32> to vector<4x256xf32>
    %cst = arith.constant dense<0.000000e+00> : vector<4x256xf32>
    %3 = tpu.matmul %0, %2, %cst {dimension_numbers = #tpu.dot_dimension_numbers<[1], [0], [0], [1], [0, 0, 1, 1], [], []>, precision = #tpu.contract_precision<fp32>} : vector<4x4xf32>, vector<4x256xf32>, vector<4x256xf32> -> vector<4x256xf32>
    %c0_4 = arith.constant 0 : index
    %c0_5 = arith.constant 0 : index
    %c0_6 = arith.constant 0 : index
    %4 = vector.load %arg4[%c0_4, %c0_5, %c0_6] : memref<1x4x256xf32, #tpu.memory_space<vmem>>, vector<1x4x256xf32>
    %5 = vector.shape_cast %4 : vector<1x4x256xf32> to vector<4x256xf32>
    %6 = vector.shape_cast %3 : vector<4x256xf32> to vector<1x4x256xf32>
    tpu.vector_store %arg4[%c0_4, %c0_5, %c0_6], %6 {strides = array<i32>} : memref<1x4x256xf32, #tpu.memory_space<vmem>>, vector<1x4x256xf32>,
    return
  }
  func.func @transform_0(%arg0: i32, %arg1: i32) -> (i32, i32, i32) {
    %c0_i32 = arith.constant 0 : i32
    %c0_i32_0 = arith.constant 0 : i32
    return %arg0, %c0_i32, %arg1 : i32, i32, i32
  }
  func.func @transform_1(%arg0: i32, %arg1: i32) -> (i32, i32) {
    %c0_i32 = arith.constant 0 : i32
    %c0_i32_0 = arith.constant 0 : i32
    %c0_i32_1 = arith.constant 0 : i32
    return %c0_i32, %c0_i32_0 : i32, i32
  }
  func.func @transform_2(%arg0: i32, %arg1: i32) -> (i32, i32, i32) {
    %c0_i32 = arith.constant 0 : i32
    %c0_i32_0 = arith.constant 0 : i32
    return %arg0, %c0_i32, %arg1 : i32, i32, i32
  }
}

</mosaic_0001>

<llo_original>
// kernel: tpu_custom_call.1
$region0: #{tpu_custom_call.1}
  #allocation0 [shape = 'u32[]', space=smem, size = 0x4, offset = 0x4, fixed_abs, tag = 'smem constant byte address 0x4 - core index']
  #allocation1 [shape = 'u32[72,128]{1,0:T(1,128)}', space=vmem, size = 0x9000, scoped, tag = 'internal scratch']
  %s0 = inlined_call_operand.hbm [shape: f32[2,4,256], index: 0, kind: input, shape index: {}]
  %s1 = inlined_call_operand.hbm [shape: f32[4,4], index: 1, kind: input, shape index: {}]
  %s2 = inlined_call_operand.hbm [shape: f32[2,4,256], index: 2, kind: output, shape index: {}]
  %s3 = sld [smem:[#allocation0]]
  $region49: #{tpu_custom_call.1} parent=0
    _
  %s5 = ssub.s32 1, %s3
  %s6 = scalar_select 0, %s5, %s3
  $region1: #{tpu_custom_call.1} parent=0
    #allocation2 [shape = 'u8[8192]{0}', space=vmem, size = 0x2000, scoped, tag = 'input window, operand 0']
    #allocation3 [shape = 's32[2]{0}', space=sflag, size = 0x8, scoped, tag = 'scoped memory for tpu_custom_call.1']
    #allocation4 [shape = 's32[2]{0}', space=sflag, size = 0x8, scoped, tag = 'scoped memory for tpu_custom_call.1']
    #allocation5 [shape = 'u8[2048]{0}', space=vmem, size = 0x800, scoped, tag = 'input window, operand 1, single buffered']
    #allocation6 [shape = 's32[1]{0}', space=sflag, size = 0x4, scoped, tag = 'scoped memory for tpu_custom_call.1']
    #allocation7 [shape = 'u8[8192]{0}', space=vmem, size = 0x2000, scoped, tag = 'output window, operand 0']
    %7 = vsyncpa [#allocation3], 0
    %s8 = scalar_lea.sflag [#allocation3], 1
    %9 = vsyncpa %s8, 0
    %10 = vsyncpa [#allocation6], 0
    %11 = vsyncpa [#allocation4], 0
    %s12 = scalar_lea.sflag [#allocation4], 1
    %13 = vsyncpa %s12, 0
    loop: start=0, step=1, limit=4
    $region2: #{tpu_custom_call.1} parent=1 // loop_pre_header
      _
    $region3: #{tpu_custom_call.1} parent=1 // loop_header
      %s15 = sphi 0, %s19
      %p16 = scmp.ge.s32.totalorder %s15, 4
      %s22 = sphi 0, %s34
      %s23 = sphi 0, %s30
      %s24 = sphi 0, %s22
      %s25 = sphi 0, %s23
      %s26 = sphi 0, %s24
      %s27 = sphi 0, %s25
      %s39 = sphi 0, %s41
      %s42 = sphi 0, %s39
      %s43 = sphi 0, %s42
      %s59 = sphi 0, %s43
      %s63 = sphi 0, %s63
      %s65 = sphi 0, %s63
      %s66 = sphi 0, %s65
      %s80 = sphi 0, %s66
      %s88 = sphi 0, %s90
      %s91 = sphi 0, %s88
      %s92 = sphi 0, %s91
      %s108 = sphi 0, %s92
    $region4: #{tpu_custom_call.1} parent=1 // loop_header_branch
      %18 = sbr.rel (%p16) target = $region8
    $region5: #{tpu_custom_call.1} parent=1 // loop_body
      %s20 = ssub.s32 %s15, 1
      %s21 = ssub.s32 %s15, 2
      %s28 = sadd.s32 1, %s23
      %p29 = scmp.ge.s32.totalorder %s28, 1
      %s30 = scalar_select %p29, 0, %s28
      %s31 = sadd.s32 1, %s22
      %s32 = scalar_select %p29, %s31, %s22
      %p33 = scmp.ge.s32.totalorder %s32, 2
      %s34 = scalar_select %p33, 0, %s32
      %s35 = ssub.s32 %s22, %s34
      %s36 = ssub.s32 %s23, %s30
      %s37 = sor.u32 %s35, %s36
      %p38 = scmp.eq.s32.totalorder %s37, 0
      %s40 = sadd.s32 %s39, 1
      %s41 = scalar_select %p38, %s39, %s40
      %p44 = pneg %p38
      %p45 = scmp.eq.s32.totalorder %s15, 1
      %p46 = por %p44, %p45
      %p47 = scmp.ne.s32.totalorder %s39, %s42
      %p48 = scmp.eq.s32.totalorder %s15, 0
      %p49 = por %p47, %p48
      %p50 = scmp.ne.s32.totalorder %s39, %s42
      %p51 = scmp.eq.s32.totalorder %s20, 1
      %p52 = por %p50, %p51
      %p53 = scmp.ne.s32.totalorder %s42, %s43
      %p54 = scmp.eq.s32.totalorder %s20, 0
      %p55 = por %p53, %p54
      %p56 = scmp.ne.s32.totalorder %s42, %s43
      %p57 = scmp.eq.s32.totalorder %s21, 1
      %p58 = por %p56, %p57
      %p60 = scmp.ne.s32.totalorder %s43, %s59
      %p61 = scmp.eq.s32.totalorder %s21, 0
      %p62 = por %p60, %p61
      %s64 = sadd.s32 %s63, 1
      %p67 = scmp.eq.s32.totalorder %s15, 1
      %p68 = scmp.ne.s32.totalorder %s63, %s65
      %p69 = scmp.eq.s32.totalorder %s15, 0
      %p70 = por %p68, %p69
      %p71 = scmp.ne.s32.totalorder %s63, %s65
      %p72 = scmp.eq.s32.totalorder %s20, 1
      %p73 = por %p71, %p72
      %p74 = scmp.ne.s32.totalorder %s65, %s66
      %p75 = scmp.eq.s32.totalorder %s20, 0
      %p76 = por %p74, %p75
      %p77 = scmp.ne.s32.totalorder %s65, %s66
      %p78 = scmp.eq.s32.totalorder %s21, 1
      %p79 = por %p77, %p78
      %p81 = scmp.ne.s32.totalorder %s66, %s80
      %p82 = scmp.eq.s32.totalorder %s21, 0
      %p83 = por %p81, %p82
      %s84 = ssub.s32 %s22, %s34
      %s85 = ssub.s32 %s23, %s30
      %s86 = sor.u32 %s84, %s85
      %p87 = scmp.eq.s32.totalorder %s86, 0
      %s89 = sadd.s32 %s88, 1
      %s90 = scalar_select %p87, %s88, %s89
      %p93 = pneg %p87
      %p94 = scmp.eq.s32.totalorder %s15, 1
      %p95 = por %p93, %p94
      %p96 = scmp.ne.s32.totalorder %s88, %s91
      %p97 = scmp.eq.s32.totalorder %s15, 0
      %p98 = por %p96, %p97
      %p99 = scmp.ne.s32.totalorder %s88, %s91
      %p100 = scmp.eq.s32.totalorder %s20, 1
      %p101 = por %p99, %p100
      %p102 = scmp.ne.s32.totalorder %s91, %s92
      %p103 = scmp.eq.s32.totalorder %s20, 0
      %p104 = por %p102, %p103
      %p105 = scmp.ne.s32.totalorder %s91, %s92
      %p106 = scmp.eq.s32.totalorder %s21, 1
      %p107 = por %p105, %p106
      %p109 = scmp.ne.s32.totalorder %s92, %s108
      %p110 = scmp.eq.s32.totalorder %s21, 0
      %p111 = por %p109, %p110
      %p112 = scmp.le.s32.totalorder 1, %s15
      %p113 = scmp.lt.s32.totalorder %s15, 3
      %p114 = pnand %p112, %p113
      %p115 = pneg %p114
      // Predicated region
      $region9: #{tpu_custom_call.1} parent=5 // pred_check
        _
      $region10: #{tpu_custom_call.1} parent=5 // pred_check_branch
        %117 = sbr.rel (%p114) target = $region12
      $region11: #{tpu_custom_call.1} parent=5 // pred_region
        %s118 = ssub.s32 %s15, 1
        // Predicated region
        $region13: #{tpu_custom_call.1} parent=11 // pred_check
          %p119 = pneg %p76
        $region14: #{tpu_custom_call.1} parent=11 // pred_check_branch
          %121 = sbr.rel (%p119) target = $region16
        $region15: #{tpu_custom_call.1} parent=11 // pred_region
          %123 = vsyncadd [#allocation6], 0
          %s125 = sshll.u32 %s1, 4
          %s126 = int_to_ptr.hbm [resolvable:$true] %s125
          %s127 = sshll.u32 [#allocation5], 4
          %s128 = int_to_ptr.vmem [resolvable:$true] %s127
          %130 = dma.hbm_to_vmem [thread:$0]  %s126, 64, %s128, [#allocation6]
        $region16: #{tpu_custom_call.1} parent=11 // pred_fallthru
          _
      $region12: #{tpu_custom_call.1} parent=5 // pred_fallthru
        _
      %p131 = scmp.lt.s32.totalorder %s15, 2
      // Predicated region
      $region17: #{tpu_custom_call.1} parent=5 // pred_check
        %p132 = pneg %p131
      $region18: #{tpu_custom_call.1} parent=5 // pred_check_branch
        %134 = sbr.rel (%p132) target = $region20
      $region19: #{tpu_custom_call.1} parent=5 // pred_region
        // Predicated region
        $region21: #{tpu_custom_call.1} parent=19 // pred_check
          %p135 = pneg %p49
        $region22: #{tpu_custom_call.1} parent=19 // pred_check_branch
          %137 = sbr.rel (%p135) target = $region24
        $region23: #{tpu_custom_call.1} parent=19 // pred_region
          %s138 = sand.u32 %s39, 1
          %s139 = scalar_lea.sflag [#allocation3], %s138
          %s140 = sand.u32 %s39, 1
          %s141 = smul.addr %s140, 8
          %s142 = scalar_lea.vmem [#allocation2], %s141
          %s143 = smul.u32 2, %s23
          %145 = vsyncadd %s139, 0
          %s146 = smul.addr %s22, 2
          %s147 = sadd.s32 %s143, %s146
          %s148 = smul.addr %s147, 4
          %s149 = scalar_lea.hbm %s0, %s148
          %s151 = sshll.u32 %s149, 4
          %s152 = int_to_ptr.hbm [resolvable:$true] %s151
          %s153 = sshll.u32 %s142, 4
          %s154 = int_to_ptr.vmem [resolvable:$true] %s153
          %156 = dma.hbm_to_vmem [thread:$0]  %s152, 128, %s154, %s139
        $region24: #{tpu_custom_call.1} parent=19 // pred_fallthru
          _
      $region20: #{tpu_custom_call.1} parent=5 // pred_fallthru
        _
      %p157 = scmp.le.s32.totalorder 1, %s15
      %p158 = scmp.lt.s32.totalorder %s15, 3
      %p159 = pnand %p157, %p158
      %p160 = pneg %p159
      // Predicated region
      $region25: #{tpu_custom_call.1} parent=5 // pred_check
        _
      $region26: #{tpu_custom_call.1} parent=5 // pred_check_branch
        %162 = sbr.rel (%p159) target = $region28
      $region27: #{tpu_custom_call.1} parent=5 // pred_region
        %s163 = ssub.s32 %s15, 1
        %s164 = sand.u32 %s42, 1
        %s165 = scalar_lea.sflag [#allocation3], %s164
        %s166 = sand.u32 %s42, 1
        %s167 = smul.addr %s166, 8
        %s168 = scalar_lea.vmem [#allocation2], %s167
        // Predicated region
        $region29: #{tpu_custom_call.1} parent=27 // pred_check
          %p169 = pneg %p55
        $region30: #{tpu_custom_call.1} parent=27 // pred_check_branch
          %171 = sbr.rel (%p169) target = $region32
        $region31: #{tpu_custom_call.1} parent=27 // pred_region
          %173 = dma.done %s165, 128
        $region32: #{tpu_custom_call.1} parent=27 // pred_fallthru
          _
        // Predicated region
        $region33: #{tpu_custom_call.1} parent=27 // pred_check
          %p174 = pneg %p76
        $region34: #{tpu_custom_call.1} parent=27 // pred_check_branch
          %176 = sbr.rel (%p174) target = $region36
        $region35: #{tpu_custom_call.1} parent=27 // pred_region
          %178 = dma.done [#allocation6], 64
        $region36: #{tpu_custom_call.1} parent=27 // pred_fallthru
          _
        %s179 = sand.u32 %s42, 1
        %s180 = scalar_lea.sflag [#allocation3], %s179
        %s181 = sand.u32 %s42, 1
        %s182 = smul.addr %s181, 8
        %s183 = scalar_lea.vmem [#allocation2], %s182
        %p184 = pneg %p55
        %p185 = pneg %p52
        %p186 = pneg %p76
        %p187 = pneg %p73
        %p188 = pneg %p104
        %p189 = pneg %p101
        %s190 = sand.u32 %s91, 1
        %s191 = scalar_lea.sflag [#allocation4], %s190
        %s192 = sand.u32 %s91, 1
        %s193 = smul.addr %s192, 8
        %s194 = scalar_lea.vmem [#allocation7], %s193
        %s195 = smul.u32 2, %s25
        %s196 = smul.u32 2, %s25
        %v197 = vld [vmem:[#allocation5] sm:$0xf]
        %v198 = vld [vmem:[%s168] sm:$0xff]
        %200 = vst [vmem:[#allocation1] ss:$2 sm:$0xff] %v198
        %v201 = vld.sshfl [vmem:[#allocation1] sm:$0xff pattern:$0x75316420]
        %v202 = vld.sshfl [vmem:[#allocation1 + $0x8] sm:$0xff pattern:$0x75316420]
        %vm203 = vcmask 31744
        %v205 = vsel %vm203, %v197, 0
        %vm207 = vcmask 1043456
        %v208 = vsel %vm207, %v201, 0
        %v210 = vsel %vm207, %v202, 0
        %212 = vmatpush.msra.mxu0 0.0
        %213 = vmatpush.msra.mxu0 0.0
        %214 = vmatpush.msra.mxu0 0.0
        %215 = vmatpush.msra.mxu0 0.0
        %216 = vmatpush.msra.mxu0 0.0
        %217 = vmatpush.msra.mxu0 0.0
        %218 = vmatpush.msra.mxu0 0.0
        %219 = vmatpush.msra.mxu0 0.0
        %220 = vmatpush.msra.mxu0 0.0
        %221 = vmatpush.msra.mxu0 0.0
        %222 = vmatpush.msra.mxu0 0.0
        %223 = vmatpush.msra.mxu0 0.0
        %224 = vmatpush.msra.mxu0 0.0
        %225 = vmatpush.msra.mxu0 0.0
        %226 = vmatpush.msra.mxu0 0.0
        %v227 = vand.u32 %v208, 4294901760
        %228 = vmatpush.msra.mxu0 %v227
        %v229 = vand.u32 %v205, 4294901760
        %v230 = vsub.f32 %v205, %v229
        %v231 = vand.u32 %v230, 4294901760
        %v232 = vsub.f32 %v230, %v231
        %v233 = vand.u32 %v232, 4294901760
        %234 = vmatmul.f32.gmra.mxu0 %v233
        %v235 = vpop.f32.mrf.mxu0
        %v236 = vadd.f32 0.0, %v235
        %237 = vdwg.mxu0
        %238 = vmatpush.msra.mxu0 0.0
        %239 = vmatpush.msra.mxu0 0.0
        %240 = vmatpush.msra.mxu0 0.0
        %241 = vmatpush.msra.mxu0 0.0
        %242 = vmatpush.msra.mxu0 0.0
        %243 = vmatpush.msra.mxu0 0.0
        %244 = vmatpush.msra.mxu0 0.0
        %245 = vmatpush.msra.mxu0 0.0
        %246 = vmatpush.msra.mxu0 0.0
        %247 = vmatpush.msra.mxu0 0.0
        %248 = vmatpush.msra.mxu0 0.0
        %249 = vmatpush.msra.mxu0 0.0
        %250 = vmatpush.msra.mxu0 0.0
        %251 = vmatpush.msra.mxu0 0.0
        %252 = vmatpush.msra.mxu0 0.0
        %v253 = vand.u32 %v208, 4294901760
        %v254 = vsub.f32 %v208, %v253
        %v255 = vand.u32 %v254, 4294901760
        %v256 = vsub.f32 %v254, %v255
        %v257 = vand.u32 %v256, 4294901760
        %258 = vmatpush.msra.mxu0 %v257
        %v259 = vand.u32 %v205, 4294901760
        %260 = vmatmul.f32.gmra.mxu0 %v259
        %v261 = vpop.f32.mrf.mxu0
        %v262 = vadd.f32 %v236, %v261
        %263 = vdwg.mxu0
        %264 = vmatpush.msra.mxu0 0.0
        %265 = vmatpush.msra.mxu0 0.0
        %266 = vmatpush.msra.mxu0 0.0
        %267 = vmatpush.msra.mxu0 0.0
        %268 = vmatpush.msra.mxu0 0.0
        %269 = vmatpush.msra.mxu0 0.0
        %270 = vmatpush.msra.mxu0 0.0
        %271 = vmatpush.msra.mxu0 0.0
        %272 = vmatpush.msra.mxu0 0.0
        %273 = vmatpush.msra.mxu0 0.0
        %274 = vmatpush.msra.mxu0 0.0
        %275 = vmatpush.msra.mxu0 0.0
        %276 = vmatpush.msra.mxu0 0.0
        %277 = vmatpush.msra.mxu0 0.0
        %278 = vmatpush.msra.mxu0 0.0
        %v279 = vand.u32 %v208, 4294901760
        %v280 = vsub.f32 %v208, %v279
        %281 = vmatpush.msra.mxu0 %v280
        %v282 = vand.u32 %v205, 4294901760
        %v283 = vsub.f32 %v205, %v282
        %284 = vmatmul.f32.gmra.mxu0 %v283
        %v285 = vpop.f32.mrf.mxu0
        %v286 = vadd.f32 %v262, %v285
        %287 = vdwg.mxu0
        %288 = vmatpush.msra.mxu0 0.0
        %289 = vmatpush.msra.mxu0 0.0
        %290 = vmatpush.msra.mxu0 0.0
        %291 = vmatpush.msra.mxu0 0.0
        %292 = vmatpush.msra.mxu0 0.0
        %293 = vmatpush.msra.mxu0 0.0
        %294 = vmatpush.msra.mxu0 0.0
        %295 = vmatpush.msra.mxu0 0.0
        %296 = vmatpush.msra.mxu0 0.0
        %297 = vmatpush.msra.mxu0 0.0
        %298 = vmatpush.msra.mxu0 0.0
        %299 = vmatpush.msra.mxu0 0.0
        %300 = vmatpush.msra.mxu0 0.0
        %301 = vmatpush.msra.mxu0 0.0
        %302 = vmatpush.msra.mxu0 0.0
        %v303 = vand.u32 %v208, 4294901760
        %304 = vmatpush.msra.mxu0 %v303
        %v305 = vand.u32 %v205, 4294901760
        %v306 = vsub.f32 %v205, %v305
        %v307 = vand.u32 %v306, 4294901760
        %308 = vmatmul.f32.gmra.mxu0 %v307
        %v309 = vpop.f32.mrf.mxu0
        %v310 = vadd.f32 %v286, %v309
        %311 = vdwg.mxu0
        %312 = vmatpush.msra.mxu0 0.0
        %313 = vmatpush.msra.mxu0 0.0
        %314 = vmatpush.msra.mxu0 0.0
        %315 = vmatpush.msra.mxu0 0.0
        %316 = vmatpush.msra.mxu0 0.0
        %317 = vmatpush.msra.mxu0 0.0
        %318 = vmatpush.msra.mxu0 0.0
        %319 = vmatpush.msra.mxu0 0.0
        %320 = vmatpush.msra.mxu0 0.0
        %321 = vmatpush.msra.mxu0 0.0
        %322 = vmatpush.msra.mxu0 0.0
        %323 = vmatpush.msra.mxu0 0.0
        %324 = vmatpush.msra.mxu0 0.0
        %325 = vmatpush.msra.mxu0 0.0
        %326 = vmatpush.msra.mxu0 0.0
        %v327 = vand.u32 %v208, 4294901760
        %v328 = vsub.f32 %v208, %v327
        %v329 = vand.u32 %v328, 4294901760
        %330 = vmatpush.msra.mxu0 %v329
        %v331 = vand.u32 %v205, 4294901760
        %332 = vmatmul.f32.gmra.mxu0 %v331
        %v333 = vpop.f32.mrf.mxu0
        %v334 = vadd.f32 %v310, %v333
        %335 = vdwg.mxu0
        %336 = vmatpush.msra.mxu0 0.0
        %337 = vmatpush.msra.mxu0 0.0
        %338 = vmatpush.msra.mxu0 0.0
        %339 = vmatpush.msra.mxu0 0.0
        %340 = vmatpush.msra.mxu0 0.0
        %341 = vmatpush.msra.mxu0 0.0
        %342 = vmatpush.msra.mxu0 0.0
        %343 = vmatpush.msra.mxu0 0.0
        %344 = vmatpush.msra.mxu0 0.0
        %345 = vmatpush.msra.mxu0 0.0
        %346 = vmatpush.msra.mxu0 0.0
        %347 = vmatpush.msra.mxu0 0.0
        %348 = vmatpush.msra.mxu0 0.0
        %349 = vmatpush.msra.mxu0 0.0
        %350 = vmatpush.msra.mxu0 0.0
        %v351 = vand.u32 %v208, 4294901760
        %352 = vmatpush.msra.mxu0 %v351
        %v353 = vand.u32 %v205, 4294901760
        %354 = vmatmul.f32.gmra.mxu0 %v353
        %v355 = vpop.f32.mrf.mxu0
        %v356 = vadd.f32 %v334, %v355
        %357 = vdwg.mxu0
        %358 = vmatpush.msra.mxu0 0.0
        %359 = vmatpush.msra.mxu0 0.0
        %360 = vmatpush.msra.mxu0 0.0
        %361 = vmatpush.msra.mxu0 0.0
        %362 = vmatpush.msra.mxu0 0.0
        %363 = vmatpush.msra.mxu0 0.0
        %364 = vmatpush.msra.mxu0 0.0
        %365 = vmatpush.msra.mxu0 0.0
        %366 = vmatpush.msra.mxu0 0.0
        %367 = vmatpush.msra.mxu0 0.0
        %368 = vmatpush.msra.mxu0 0.0
        %369 = vmatpush.msra.mxu0 0.0
        %370 = vmatpush.msra.mxu0 0.0
        %371 = vmatpush.msra.mxu0 0.0
        %372 = vmatpush.msra.mxu0 0.0
        %v373 = vand.u32 %v210, 4294901760
        %374 = vmatpush.msra.mxu0 %v373
        %v375 = vand.u32 %v205, 4294901760
        %v376 = vsub.f32 %v205, %v375
        %v377 = vand.u32 %v376, 4294901760
        %v378 = vsub.f32 %v376, %v377
        %v379 = vand.u32 %v378, 4294901760
        %380 = vmatmul.f32.gmra.mxu0 %v379
        %v381 = vpop.f32.mrf.mxu0
        %v382 = vadd.f32 0.0, %v381
        %383 = vdwg.mxu0
        %384 = vmatpush.msra.mxu0 0.0
        %385 = vmatpush.msra.mxu0 0.0
        %386 = vmatpush.msra.mxu0 0.0
        %387 = vmatpush.msra.mxu0 0.0
        %388 = vmatpush.msra.mxu0 0.0
        %389 = vmatpush.msra.mxu0 0.0
        %390 = vmatpush.msra.mxu0 0.0
        %391 = vmatpush.msra.mxu0 0.0
        %392 = vmatpush.msra.mxu0 0.0
        %393 = vmatpush.msra.mxu0 0.0
        %394 = vmatpush.msra.mxu0 0.0
        %395 = vmatpush.msra.mxu0 0.0
        %396 = vmatpush.msra.mxu0 0.0
        %397 = vmatpush.msra.mxu0 0.0
        %398 = vmatpush.msra.mxu0 0.0
        %v399 = vand.u32 %v210, 4294901760
        %v400 = vsub.f32 %v210, %v399
        %v401 = vand.u32 %v400, 4294901760
        %v402 = vsub.f32 %v400, %v401
        %v403 = vand.u32 %v402, 4294901760
        %404 = vmatpush.msra.mxu0 %v403
        %v405 = vand.u32 %v205, 4294901760
        %406 = vmatmul.f32.gmra.mxu0 %v405
        %v407 = vpop.f32.mrf.mxu0
        %v408 = vadd.f32 %v382, %v407
        %409 = vdwg.mxu0
        %410 = vmatpush.msra.mxu0 0.0
        %411 = vmatpush.msra.mxu0 0.0
        %412 = vmatpush.msra.mxu0 0.0
        %413 = vmatpush.msra.mxu0 0.0
        %414 = vmatpush.msra.mxu0 0.0
        %415 = vmatpush.msra.mxu0 0.0
        %416 = vmatpush.msra.mxu0 0.0
        %417 = vmatpush.msra.mxu0 0.0
        %418 = vmatpush.msra.mxu0 0.0
        %419 = vmatpush.msra.mxu0 0.0
        %420 = vmatpush.msra.mxu0 0.0
        %421 = vmatpush.msra.mxu0 0.0
        %422 = vmatpush.msra.mxu0 0.0
        %423 = vmatpush.msra.mxu0 0.0
        %424 = vmatpush.msra.mxu0 0.0
        %v425 = vand.u32 %v210, 4294901760
        %v426 = vsub.f32 %v210, %v425
        %427 = vmatpush.msra.mxu0 %v426
        %v428 = vand.u32 %v205, 4294901760
        %v429 = vsub.f32 %v205, %v428
        %430 = vmatmul.f32.gmra.mxu0 %v429
        %v431 = vpop.f32.mrf.mxu0
        %v432 = vadd.f32 %v408, %v431
        %433 = vdwg.mxu0
        %434 = vmatpush.msra.mxu0 0.0
        %435 = vmatpush.msra.mxu0 0.0
        %436 = vmatpush.msra.mxu0 0.0
        %437 = vmatpush.msra.mxu0 0.0
        %438 = vmatpush.msra.mxu0 0.0
        %439 = vmatpush.msra.mxu0 0.0
        %440 = vmatpush.msra.mxu0 0.0
        %441 = vmatpush.msra.mxu0 0.0
        %442 = vmatpush.msra.mxu0 0.0
        %443 = vmatpush.msra.mxu0 0.0
        %444 = vmatpush.msra.mxu0 0.0
        %445 = vmatpush.msra.mxu0 0.0
        %446 = vmatpush.msra.mxu0 0.0
        %447 = vmatpush.msra.mxu0 0.0
        %448 = vmatpush.msra.mxu0 0.0
        %v449 = vand.u32 %v210, 4294901760
        %450 = vmatpush.msra.mxu0 %v449
        %v451 = vand.u32 %v205, 4294901760
        %v452 = vsub.f32 %v205, %v451
        %v453 = vand.u32 %v452, 4294901760
        %454 = vmatmul.f32.gmra.mxu0 %v453
        %v455 = vpop.f32.mrf.mxu0
        %v456 = vadd.f32 %v432, %v455
        %457 = vdwg.mxu0
        %458 = vmatpush.msra.mxu0 0.0
        %459 = vmatpush.msra.mxu0 0.0
        %460 = vmatpush.msra.mxu0 0.0
        %461 = vmatpush.msra.mxu0 0.0
        %462 = vmatpush.msra.mxu0 0.0
        %463 = vmatpush.msra.mxu0 0.0
        %464 = vmatpush.msra.mxu0 0.0
        %465 = vmatpush.msra.mxu0 0.0
        %466 = vmatpush.msra.mxu0 0.0
        %467 = vmatpush.msra.mxu0 0.0
        %468 = vmatpush.msra.mxu0 0.0
        %469 = vmatpush.msra.mxu0 0.0
        %470 = vmatpush.msra.mxu0 0.0
        %471 = vmatpush.msra.mxu0 0.0
        %472 = vmatpush.msra.mxu0 0.0
        %v473 = vand.u32 %v210, 4294901760
        %v474 = vsub.f32 %v210, %v473
        %v475 = vand.u32 %v474, 4294901760
        %476 = vmatpush.msra.mxu0 %v475
        %v477 = vand.u32 %v205, 4294901760
        %478 = vmatmul.f32.gmra.mxu0 %v477
        %v479 = vpop.f32.mrf.mxu0
        %v480 = vadd.f32 %v456, %v479
        %481 = vdwg.mxu0
        %482 = vmatpush.msra.mxu0 0.0
        %483 = vmatpush.msra.mxu0 0.0
        %484 = vmatpush.msra.mxu0 0.0
        %485 = vmatpush.msra.mxu0 0.0
        %486 = vmatpush.msra.mxu0 0.0
        %487 = vmatpush.msra.mxu0 0.0
        %488 = vmatpush.msra.mxu0 0.0
        %489 = vmatpush.msra.mxu0 0.0
        %490 = vmatpush.msra.mxu0 0.0
        %491 = vmatpush.msra.mxu0 0.0
        %492 = vmatpush.msra.mxu0 0.0
        %493 = vmatpush.msra.mxu0 0.0
        %494 = vmatpush.msra.mxu0 0.0
        %495 = vmatpush.msra.mxu0 0.0
        %496 = vmatpush.msra.mxu0 0.0
        %v497 = vand.u32 %v210, 4294901760
        %498 = vmatpush.msra.mxu0 %v497
        %v499 = vand.u32 %v205, 4294901760
        %500 = vmatmul.f32.gmra.mxu0 %v499
        %v501 = vpop.f32.mrf.mxu0
        %v502 = vadd.f32 %v480, %v501
        %503 = vdwg.mxu0
        %v506 = vrot.slane %v502, 4
        %v507 = vsel %vm207, %v356, %v506
        %509 = vst [vmem:[%s194] sm:$0xff] %v507
        %s510 = sand.u32 %s91, 1
        %s511 = scalar_lea.sflag [#allocation4], %s510
        %s512 = sand.u32 %s91, 1
        %s513 = smul.addr %s512, 8
        %s514 = scalar_lea.vmem [#allocation7], %s513
        // Predicated region
        $region37: #{tpu_custom_call.1} parent=27 // pred_check
          %p515 = pneg %p101
        $region38: #{tpu_custom_call.1} parent=27 // pred_check_branch
          %517 = sbr.rel (%p515) target = $region40
        $region39: #{tpu_custom_call.1} parent=27 // pred_region
          %s518 = smul.u32 2, %s25
          %520 = vsyncadd %s511, 0
          %s521 = smul.addr %s24, 2
          %s522 = sadd.s32 %s518, %s521
          %s523 = smul.addr %s522, 4
          %s524 = scalar_lea.hbm %s2, %s523
          %s526 = sshll.u32 %s514, 4
          %s527 = int_to_ptr.vmem [resolvable:$true] %s526
          %s528 = sshll.u32 %s524, 4
          %s529 = int_to_ptr.hbm [resolvable:$true] %s528
          %531 = dma.vmem_to_hbm [thread:$0]  %s527, 128, %s529, %s511
        $region40: #{tpu_custom_call.1} parent=27 // pred_fallthru
          _
      $region28: #{tpu_custom_call.1} parent=5 // pred_fallthru
        _
      %p532 = scmp.le.s32.totalorder 2, %s15
      // Predicated region
      $region41: #{tpu_custom_call.1} parent=5 // pred_check
        %p533 = pneg %p532
      $region42: #{tpu_custom_call.1} parent=5 // pred_check_branch
        %535 = sbr.rel (%p533) target = $region44
      $region43: #{tpu_custom_call.1} parent=5 // pred_region
        %s536 = ssub.s32 %s15, 2
        // Predicated region
        $region45: #{tpu_custom_call.1} parent=43 // pred_check
          %p537 = pneg %p107
        $region46: #{tpu_custom_call.1} parent=43 // pred_check_branch
          %539 = sbr.rel (%p537) target = $region48
        $region47: #{tpu_custom_call.1} parent=43 // pred_region
          %s540 = sand.u32 %s92, 1
          %s541 = scalar_lea.sflag [#allocation4], %s540
          %s542 = sand.u32 %s92, 1
          %s543 = smul.addr %s542, 8
          %s544 = scalar_lea.vmem [#allocation7], %s543
          %546 = dma.done %s541, 128
        $region48: #{tpu_custom_call.1} parent=43 // pred_fallthru
          _
      $region44: #{tpu_custom_call.1} parent=5 // pred_fallthru
        _
    $region6: #{tpu_custom_call.1} parent=1 // loop_footer
      %s19 = sadd.s32 1, %s15
    $region7: #{tpu_custom_call.1} parent=1 // loop_footer_branch
      %14 = sbr.rel target = $region3
    $region8: #{tpu_custom_call.1} parent=1 // loop_exit
      _
    %547 = vsyncpa [#allocation3], 1
    %s548 = scalar_lea.sflag [#allocation3], 1
    %549 = vsyncpa %s548, 1
    %550 = vsyncpa [#allocation6], 1
    %551 = vsyncpa [#allocation4], 1
    %s552 = scalar_lea.sflag [#allocation4], 1
    %553 = vsyncpa %s552, 1

</llo_original>
